<compile_context>
chip_gen: v6e
topology: v6e:2x2x1
jax: 0.10.0
libtpu: 0.0.40
codegen_flags: <defaults>
</compile_context>

<pallas_src>
import jax
import jax.numpy as jnp
from jax import lax
from jax.experimental import pallas as pl
from jax.experimental.pallas import tpu as pltpu

# StEikLoss default weights = [3000.0, 100.0, 100.0, 50.0, 100.0]
W_MANIFOLD, W_INTER, W_NORMAL, W_EIK, W_DIV = 3000.0, 100.0, 100.0, 50.0, 100.0

LANES = 128            # lane width of the streaming slabs (one vreg row)
ROW_ALIGN = 8 * LANES  # 1024: slabs are (R, 128) with R % 8 == 0
MAX_TILE_ROWS = 4096   # 512Ki points / 8 MiB (pred+grads f32) per grid step


def _tensorcores_per_device():
    """Best-effort TensorCores-per-JAX-device: 2 on megacore (v4/v5p) and v7x,
    1 on v5e/v6e.  Safe default: 1 (the core axis then disappears entirely)."""
    try:
        kind = (getattr(jax.devices()[0], "device_kind", "") or "").lower()
    except Exception:
        return 1
    if any(tag in kind for tag in ("v4", "v5p", "v7", "7x")):
        return 2
    return 1


# ---------------------------------------------------------------------------
# Pallas kernel: tiled streaming elementwise + per-lane partial-sum reduction
# ---------------------------------------------------------------------------
def _make_partial_kernel(tile_rows, tiles_per_core, num_tiles, ncores, needs_mask):
    def kernel(count_ref, pred_ref, grads_ref, eik_ref, inter_ref):
        if ncores > 1:
            core = pl.program_id(0)
            t = pl.program_id(1)
            g = core * tiles_per_core + t          # global tile index
        else:
            t = pl.program_id(0)
            g = t

        # Output blocks (8, LANES) are resident across the inner 'arbitrary' axis
        # and act as per-core, per-(sublane, lane) partial-sum accumulators.
        @pl.when(t == 0)
        def _init():
            eik_ref[...] = jnp.zeros_like(eik_ref)
            inter_ref[...] = jnp.zeros_like(inter_ref)

        def _accumulate():
            pred = pred_ref[...].astype(jnp.float32)       # (tile_rows, LANES)
            gx = grads_ref[0].astype(jnp.float32)
            gy = grads_ref[1].astype(jnp.float32)
            gz = grads_ref[2].astype(jnp.float32)

            # | ||grad||_2 - 1 |   and   exp(-100 * |pred|)
            # (kept as sqrt: s*rsqrt(s) would NaN at s == 0; EUP has slack anyway
            #  on v5e/v6e -- re-check the EUP slot on v7x after layout fixes.)
            eik_e = jnp.abs(jnp.sqrt(gx * gx + gy * gy + gz * gz) - 1.0)
            int_e = jnp.exp(-100.0 * jnp.abs(pred))

            if needs_mask:
                # Ragged tail handled in-kernel against the scalar-prefetched count
                # (free VPU work in a mem-bound kernel) instead of a padded copy.
                row = lax.broadcasted_iota(jnp.int32, (tile_rows, LANES), 0)
                lane = lax.broadcasted_iota(jnp.int32, (tile_rows, LANES), 1)
                elem = (g * tile_rows + row) * LANES + lane
                valid = elem < count_ref[0]
                eik_e = jnp.where(valid, eik_e, 0.0)
                int_e = jnp.where(valid, int_e, 0.0)

            # (8, LANES) accumulators: fold rows in vreg-sized groups -> pure VPU
            # adds, no cross-sublane XLU reduce; final collapse is in the wrapper.
            eik_ref[...] += eik_e.reshape(tile_rows // 8, 8, LANES).sum(axis=0)
            inter_ref[...] += int_e.reshape(tile_rows // 8, 8, LANES).sum(axis=0)

        if ncores > 1:
            # Duplicate (clamped) tiles on the last core are skipped.
            pl.when(g < num_tiles)(_accumulate)
        else:
            _accumulate()

    return kernel


def steik_loss_terms_pallas(pred, grads_cm, *, max_tile_rows=MAX_TILE_ROWS):
    """Fused StEik 'siren' loss terms.

    pred:     any shape with M = B*N elements (SDF predictions).
    grads_cm: channel-major gradient: shape (3, ...) with 3*M elements
              ((3, B, N) / (3, M) / (3, R, 128)).  Channel-major avoids the
              (M, 3) -> (3, M) wrapper transpose (a full extra HBM pass).
    Returns (loss, inter_term, eikonal_term).
    """
    m = pred.size
    assert grads_cm.shape[0] == 3 and grads_cm.size == 3 * m

    pred_flat = pred.reshape(-1)
    grads_flat = grads_cm.reshape(3, -1)

    # Slab geometry: (R, 128) with R a multiple of 8.  A pad copy is only forced
    # when M is not a multiple of 1024 (reshape legality), and is < 1024 elements;
    # padded elements are masked in-kernel, so the pad value is irrelevant.
    r_total = -(-m // ROW_ALIGN) * 8
    padded_m = r_total * LANES
    if padded_m != m:
        # TODO(synk): fully pad-free ragged support needs memory_space=pl.ANY +
        # manual DMA; not worth it for a <1024-element tail.
        pred_flat = jnp.pad(pred_flat, (0, padded_m - m))
        grads_flat = jnp.pad(grads_flat, ((0, 0), (0, padded_m - m)))

    pred2d = pred_flat.reshape(r_total, LANES)
    grads3d = grads_flat.reshape(3, r_total, LANES)

    ncores = _tensorcores_per_device()
    tile_rows = min(max_tile_rows, r_total)
    tile_rows = max(8, (tile_rows // 8) * 8)
    num_tiles = -(-r_total // tile_rows)
    if num_tiles < ncores:
        ncores = 1                       # not enough tiles to split across cores
    tiles_per_core = -(-num_tiles // ncores)

    # Mask only when it can actually trigger (ragged M or ragged last block).
    needs_mask = (padded_m != m) or (r_total % tile_rows != 0)
    kernel = _make_partial_kernel(tile_rows, tiles_per_core, num_tiles, ncores,
                                  needs_mask)

    if ncores > 1:
        last = num_tiles - 1
        grid = (ncores, tiles_per_core)
        pred_spec = pl.BlockSpec(
            (tile_rows, LANES),
            lambda c, t, cnt: (jnp.minimum(c * tiles_per_core + t, last), 0))
        grads_spec = pl.BlockSpec(
            (3, tile_rows, LANES),
            lambda c, t, cnt: (0, jnp.minimum(c * tiles_per_core + t, last), 0))
        acc_spec = pl.BlockSpec((8, LANES), lambda c, t, cnt: (c, 0))
        dim_sem = ("parallel", "arbitrary")
    else:
        grid = (num_tiles,)
        pred_spec = pl.BlockSpec((tile_rows, LANES), lambda t, cnt: (t, 0))
        grads_spec = pl.BlockSpec((3, tile_rows, LANES), lambda t, cnt: (0, t, 0))
        acc_spec = pl.BlockSpec((8, LANES), lambda t, cnt: (0, 0))
        dim_sem = ("arbitrary",)

    part_shape = jax.ShapeDtypeStruct((ncores * 8, LANES), jnp.float32)
    count = jnp.full((1,), m, dtype=jnp.int32)

    eik_part, inter_part = pl.pallas_call(
        kernel,
        out_shape=(part_shape, part_shape),
        grid_spec=pltpu.PrefetchScalarGridSpec(
            num_scalar_prefetch=1,
            grid=grid,
            in_specs=[pred_spec, grads_spec],
            out_specs=(acc_spec, acc_spec),
        ),
        compiler_params=pltpu.CompilerParams(
            dimension_semantics=dim_sem,
            vmem_limit_bytes=32 * 1024 * 1024,
        ),
    )(count, pred2d, grads3d)

    inv_m = 1.0 / float(m)
    eik = jnp.sum(eik_part) * inv_m
    inter = jnp.sum(inter_part) * inv_m
    loss = W_INTER * inter + W_EIK * eik
    return loss, inter, eik


# ---------------------------------------------------------------------------
# Plain-JAX glue: synthetic network (channel-major), module-mirroring forward
# ---------------------------------------------------------------------------
def mlp_predict_cm(points_cm, w1, b1, w2):
    """Synthetic SDF network on channel-major points.  points_cm: (3, B, N) -> (B, N)."""
    h = jnp.tanh(jnp.einsum('dbn,dh->bnh', points_cm, w1) + b1)
    return jnp.einsum('bnh,h->bn', h, w2)


def steik_loss_forward(nonmnfld_points_cm, nonmanifold_pnts_pred, nonmnfld_grad_cm,
                       remap_index):
    """Mirrors StEikLoss.forward with loss_type='siren' (use_div == False).

    nonmnfld_grad_cm is the autograd gradient in channel-major (3, B, N) layout
    (computed by the caller with jax.vjp; see __main__).  remap_index is a
    permutation and both loss terms are means, so nonmnfld_grad[:, remap_index]
    is numerically a no-op and is skipped.  NOTE: only valid for mean-based
    terms; non-'siren' loss types (div_loss) must not inherit this shortcut.
    """
    del nonmnfld_points_cm, remap_index
    loss, inter, eik = steik_loss_terms_pallas(nonmanifold_pnts_pred, nonmnfld_grad_cm)
    div_loss = jnp.zeros((1,), dtype=jnp.float32)   # 'siren' => use_div == False
    return {'loss': loss, 'inter_term': inter, 'eikonal_term': eik, 'div_loss': div_loss}


if __name__ == "__main__":
    key = jax.random.PRNGKey(0)
    B, N, D, H = 2, 512, 3, 32          # M = 1024 -> aligned, no pad / no mask path
    k1, k2, k3, k4, k5 = jax.random.split(key, 5)

    # Channel-major points (3, B, N): the producer-side layout fix -- the VJP then
    # yields the gradient directly in (3, B, N); no wrapper transpose needed.
    points_cm = jax.random.normal(k1, (D, B, N), jnp.float32)
    w1 = jax.random.normal(k2, (D, H), jnp.float32) / jnp.sqrt(float(D))
    b1 = 0.1 * jax.random.normal(k3, (H,), jnp.float32)
    w2 = jax.random.normal(k4, (H,), jnp.float32) / jnp.sqrt(float(H))
    remap_index = jax.random.permutation(k5, N)

    pred, vjp_fn = jax.vjp(lambda p: mlp_predict_cm(p, w1, b1, w2), points_cm)
    grad_cm = vjp_fn(jnp.ones_like(pred))[0]          # (3, B, N), channel-major

    out = steik_loss_forward(points_cm, pred, grad_cm, remap_index)
    out = jax.block_until_ready(out)

    # Pure-JAX reference (remap gather applied, as in the torch code; it is a
    # permutation so the means are identical).
    g_ref = jnp.moveaxis(grad_cm, 0, -1)[:, remap_index]       # (B, N, 3)
    eik_ref = jnp.mean(jnp.abs(jnp.linalg.norm(g_ref, axis=-1) - 1.0))
    inter_ref = jnp.mean(jnp.exp(-100.0 * jnp.abs(pred)))
    loss_ref = W_INTER * inter_ref + W_EIK * eik_ref
    assert jnp.allclose(out['eikonal_term'], eik_ref, rtol=1e-5, atol=1e-6)
    assert jnp.allclose(out['inter_term'], inter_ref, rtol=1e-5, atol=1e-6)
    assert jnp.allclose(out['loss'], loss_ref, rtol=1e-5, atol=1e-5)
    assert out['div_loss'].shape == (1,) and float(out['div_loss'][0]) == 0.0

    # Second check: ragged M (not a multiple of 1024) + forced multi-tile,
    # exercising the in-kernel count-mask and the t>0 accumulation path.
    B2, N2 = 2, 5000
    kk1, kk2 = jax.random.split(jax.random.PRNGKey(1))
    pred2 = jax.random.normal(kk1, (B2, N2), jnp.float32)
    grad2_cm = jax.random.normal(kk2, (3, B2, N2), jnp.float32)
    loss2, inter2, eik2 = steik_loss_terms_pallas(pred2, grad2_cm, max_tile_rows=16)
    loss2 = jax.block_until_ready(loss2)
    eik2_ref = jnp.mean(
        jnp.abs(jnp.linalg.norm(jnp.moveaxis(grad2_cm, 0, -1), axis=-1) - 1.0))
    inter2_ref = jnp.mean(jnp.exp(-100.0 * jnp.abs(pred2)))
    loss2_ref = W_INTER * inter2_ref + W_EIK * eik2_ref
    assert jnp.allclose(eik2, eik2_ref, rtol=1e-4, atol=1e-5)
    assert jnp.allclose(inter2, inter2_ref, rtol=1e-4, atol=1e-5)
    assert jnp.allclose(loss2, loss2_ref, rtol=1e-4, atol=1e-5)

    print("KERNEL_OK")
</pallas_src>

<mosaic_0001>
module attributes {stable_mosaic.version = 11 : i64} {
  func.func @kernel(%arg0: i32, %arg1: memref<1xi32, #tpu.memory_space<smem>>, %arg2: memref<8x128xf32, #tpu.memory_space<vmem>>, %arg3: memref<3x8x128xf32, #tpu.memory_space<vmem>>, %arg4: memref<8x128xf32, #tpu.memory_space<vmem>>, %arg5: memref<8x128xf32, #tpu.memory_space<vmem>>) attributes {dimension_semantics = [#tpu.dimension_semantics<arbitrary>], iteration_bounds = array<i64: 1>, scalar_prefetch = 1 : i64, scratch_operands = 0 : i64, tpu.core_type = #tpu.core_type<tc>, window_params = [{transform_indices = @transform_0, window_bounds = array<i64: 8, 128>}, {transform_indices = @transform_1, window_bounds = array<i64: 3, 8, 128>}, {pipeline_mode = #tpu.pipeline_mode<synchronous>, transform_indices = @transform_2, window_bounds = array<i64: 8, 128>}, {pipeline_mode = #tpu.pipeline_mode<synchronous>, transform_indices = @transform_3, window_bounds = array<i64: 8, 128>}]} {
    %c0_i32 = arith.constant 0 : i32
    %0 = arith.cmpi eq, %arg0, %c0_i32 : i32
    %1 = arith.extui %0 : i1 to i32
    %c0_i32_0 = arith.constant 0 : i32
    %2 = arith.cmpi ne, %1, %c0_i32_0 : i32
    scf.if %2 {
      %cst_20 = arith.constant 0.000000e+00 : f32
      %33 = vector.broadcast %cst_20 : f32 to vector<8x128xf32>
      %c0_21 = arith.constant 0 : index
      %c0_22 = arith.constant 0 : index
      %34 = vector.load %arg4[%c0_21, %c0_22] : memref<8x128xf32, #tpu.memory_space<vmem>>, vector<8x128xf32>
      tpu.vector_store %arg4[%c0_21, %c0_22], %33 {strides = array<i32>} : memref<8x128xf32, #tpu.memory_space<vmem>>, vector<8x128xf32>,
      %cst_23 = arith.constant 0.000000e+00 : f32
      %35 = vector.broadcast %cst_23 : f32 to vector<8x128xf32>
      %c0_24 = arith.constant 0 : index
      %c0_25 = arith.constant 0 : index
      %36 = vector.load %arg5[%c0_24, %c0_25] : memref<8x128xf32, #tpu.memory_space<vmem>>, vector<8x128xf32>
      tpu.vector_store %arg5[%c0_24, %c0_25], %35 {strides = array<i32>} : memref<8x128xf32, #tpu.memory_space<vmem>>, vector<8x128xf32>,
    } else {
    }
    %c0 = arith.constant 0 : index
    %c0_1 = arith.constant 0 : index
    %3 = vector.load %arg2[%c0, %c0_1] : memref<8x128xf32, #tpu.memory_space<vmem>>, vector<8x128xf32>
    %c0_2 = arith.constant 0 : index
    %c0_3 = arith.constant 0 : index
    %c0_4 = arith.constant 0 : index
    %4 = vector.load %arg3[%c0_2, %c0_3, %c0_4] : memref<3x8x128xf32, #tpu.memory_space<vmem>>, vector<1x8x128xf32>
    %5 = vector.shape_cast %4 : vector<1x8x128xf32> to vector<8x128xf32>
    %c1 = arith.constant 1 : index
    %c0_5 = arith.constant 0 : index
    %c0_6 = arith.constant 0 : index
    %6 = vector.load %arg3[%c1, %c0_5, %c0_6] : memref<3x8x128xf32, #tpu.memory_space<vmem>>, vector<1x8x128xf32>
    %7 = vector.shape_cast %6 : vector<1x8x128xf32> to vector<8x128xf32>
    %c2 = arith.constant 2 : index
    %c0_7 = arith.constant 0 : index
    %c0_8 = arith.constant 0 : index
    %8 = vector.load %arg3[%c2, %c0_7, %c0_8] : memref<3x8x128xf32, #tpu.memory_space<vmem>>, vector<1x8x128xf32>
    %9 = vector.shape_cast %8 : vector<1x8x128xf32> to vector<8x128xf32>
    %10 = arith.mulf %5, %5 : vector<8x128xf32>
    %11 = arith.mulf %7, %7 : vector<8x128xf32>
    %12 = arith.addf %10, %11 : vector<8x128xf32>
    %13 = arith.mulf %9, %9 : vector<8x128xf32>
    %14 = arith.addf %12, %13 : vector<8x128xf32>
    %15 = math.sqrt %14 : vector<8x128xf32>
    %cst = arith.constant 1.000000e+00 : f32
    %16 = vector.broadcast %cst : f32 to vector<8x128xf32>
    %17 = arith.subf %15, %16 : vector<8x128xf32>
    %18 = math.absf %17 : vector<8x128xf32>
    %19 = math.absf %3 : vector<8x128xf32>
    %cst_9 = arith.constant -1.000000e+02 : f32
    %20 = vector.broadcast %cst_9 : f32 to vector<8x128xf32>
    %21 = arith.mulf %20, %19 : vector<8x128xf32>
    %22 = math.exp %21 : vector<8x128xf32>
    %c0_10 = arith.constant 0 : index
    %c0_11 = arith.constant 0 : index
    %23 = vector.load %arg4[%c0_10, %c0_11] : memref<8x128xf32, #tpu.memory_space<vmem>>, vector<8x128xf32>
    %24 = vector.shape_cast %18 : vector<8x128xf32> to vector<1x8x128xf32>
    %cst_12 = arith.constant dense<0.000000e+00> : vector<8x128xf32>
    %25 = vector.multi_reduction <add>, %24, %cst_12 [0] : vector<1x8x128xf32> to vector<8x128xf32>
    %26 = arith.addf %23, %25 : vector<8x128xf32>
    %c0_13 = arith.constant 0 : index
    %c0_14 = arith.constant 0 : index
    %27 = vector.load %arg4[%c0_13, %c0_14] : memref<8x128xf32, #tpu.memory_space<vmem>>, vector<8x128xf32>
    tpu.vector_store %arg4[%c0_13, %c0_14], %26 {strides = array<i32>} : memref<8x128xf32, #tpu.memory_space<vmem>>, vector<8x128xf32>,
    %c0_15 = arith.constant 0 : index
    %c0_16 = arith.constant 0 : index
    %28 = vector.load %arg5[%c0_15, %c0_16] : memref<8x128xf32, #tpu.memory_space<vmem>>, vector<8x128xf32>
    %29 = vector.shape_cast %22 : vector<8x128xf32> to vector<1x8x128xf32>
    %cst_17 = arith.constant dense<0.000000e+00> : vector<8x128xf32>
    %30 = vector.multi_reduction <add>, %29, %cst_17 [0] : vector<1x8x128xf32> to vector<8x128xf32>
    %31 = arith.addf %28, %30 : vector<8x128xf32>
    %c0_18 = arith.constant 0 : index
    %c0_19 = arith.constant 0 : index
    %32 = vector.load %arg5[%c0_18, %c0_19] : memref<8x128xf32, #tpu.memory_space<vmem>>, vector<8x128xf32>
    tpu.vector_store %arg5[%c0_18, %c0_19], %31 {strides = array<i32>} : memref<8x128xf32, #tpu.memory_space<vmem>>, vector<8x128xf32>,
    return
  }
  func.func @transform_0(%arg0: i32, %arg1: memref<1xi32, #tpu.memory_space<smem>>) -> (i32, i32) {
    %c0_i32 = arith.constant 0 : i32
    %c0_i32_0 = arith.constant 0 : i32
    return %arg0, %c0_i32 : i32, i32
  }
  func.func @transform_1(%arg0: i32, %arg1: memref<1xi32, #tpu.memory_space<smem>>) -> (i32, i32, i32) {
    %c0_i32 = arith.constant 0 : i32
    %c0_i32_0 = arith.constant 0 : i32
    %c0_i32_1 = arith.constant 0 : i32
    return %c0_i32, %arg0, %c0_i32_0 : i32, i32, i32
  }
  func.func @transform_2(%arg0: i32, %arg1: memref<1xi32, #tpu.memory_space<smem>>) -> (i32, i32) {
    %c0_i32 = arith.constant 0 : i32
    %c0_i32_0 = arith.constant 0 : i32
    %c0_i32_1 = arith.constant 0 : i32
    return %c0_i32, %c0_i32_0 : i32, i32
  }
  func.func @transform_3(%arg0: i32, %arg1: memref<1xi32, #tpu.memory_space<smem>>) -> (i32, i32) {
    %c0_i32 = arith.constant 0 : i32
    %c0_i32_0 = arith.constant 0 : i32
    %c0_i32_1 = arith.constant 0 : i32
    return %c0_i32, %c0_i32_0 : i32, i32
  }
}

</mosaic_0001>

<llo_original>
// kernel: tpu_custom_call.1
$region0: #{tpu_custom_call.1}
  #allocation0 [shape = 'u32[]', space=smem, size = 0x4, offset = 0x4, fixed_abs, tag = 'smem constant byte address 0x4 - core index']
  #allocation1 [shape = 'u32[144,128]{1,0:T(1,128)}', space=vmem, size = 0x12000, scoped, tag = 'internal scratch']
  #allocation2 [shape = 's32[1]{0}', space=sflag, size = 0x4, scoped, tag = 'scoped memory for tpu_custom_call.1']
  #allocation3 [shape = 's32[1]{0:T(128)S(6)}', space=smem, size = 0x200, scoped, tag = 'prefetched SMEM operand 0']
  %s0 = inlined_call_operand.<no memory space> [shape: s32[1], index: 0, kind: input, shape index: {}]
  %s1 = inlined_call_operand.hbm [shape: f32[8,128], index: 1, kind: input, shape index: {}]
  %s2 = inlined_call_operand.hbm [shape: f32[3,8,128], index: 2, kind: input, shape index: {}]
  %s3 = inlined_call_operand.hbm [shape: f32[8,128], index: 3, kind: output, shape index: {0}]
  %s4 = inlined_call_operand.hbm [shape: f32[8,128], index: 4, kind: output, shape index: {1}]
  %5 = xla_tuple %s3, %s4
  %s6 = sld [smem:[#allocation0]]
  $region38: #{tpu_custom_call.1} parent=0
    _
  %s8 = ssub.s32 1, %s6
  %s9 = scalar_select 0, %s8, %s6
  %10 = sst [smem:[#allocation3]] %s0
  $region1: #{tpu_custom_call.1} parent=0
    #allocation4 [shape = 'u8[4096]{0}', space=vmem, size = 0x1000, scoped, tag = 'input window, operand 1, single buffered']
    #allocation5 [shape = 's32[1]{0}', space=sflag, size = 0x4, scoped, tag = 'scoped memory for tpu_custom_call.1']
    #allocation6 [shape = 's32[1]{0}', space=sflag, size = 0x4, scoped, tag = 'scoped memory for tpu_custom_call.1']
    #allocation7 [shape = 'u8[12288]{0}', space=vmem, size = 0x3000, scoped, tag = 'input window, operand 2, single buffered']
    #allocation8 [shape = 's32[1]{0}', space=sflag, size = 0x4, scoped, tag = 'scoped memory for tpu_custom_call.1']
    #allocation9 [shape = 'u8[4096]{0}', space=vmem, size = 0x1000, scoped, tag = 'output window, operand 0, single buffered']
    #allocation10 [shape = 'u8[4096]{0}', space=vmem, size = 0x1000, scoped, tag = 'output window, operand 1, single buffered']
    #allocation11 [shape = 's32[1]{0}', space=sflag, size = 0x4, scoped, tag = 'scoped memory for tpu_custom_call.1']
    %11 = vsyncpa [#allocation5], 0
    %12 = vsyncpa [#allocation8], 0
    %13 = vsyncpa [#allocation6], 0
    %14 = vsyncpa [#allocation11], 0
    // Predicated region
    $region2: #{tpu_custom_call.1} parent=1 // pred_check
      _
    $region3: #{tpu_custom_call.1} parent=1 // pred_check_branch
      %16 = sbr.rel (0) target = $region5
    $region4: #{tpu_custom_call.1} parent=1 // pred_region
      %s18 = ssub.s32 128, 128
      %19 = vsyncadd [#allocation5], %s18
      %s21 = sshll.u32 [#allocation4], 4
      %s22 = int_to_ptr.vmem [resolvable:$true] %s21
      %24 = dma.hbm_to_vmem [thread:$0]  %s1, 128, %s22, [#allocation5]
    $region5: #{tpu_custom_call.1} parent=1 // pred_fallthru
      _
    // Predicated region
    $region6: #{tpu_custom_call.1} parent=1 // pred_check
      _
    $region7: #{tpu_custom_call.1} parent=1 // pred_check_branch
      %26 = sbr.rel (0) target = $region9
    $region8: #{tpu_custom_call.1} parent=1 // pred_region
      %s28 = ssub.s32 384, 384
      %29 = vsyncadd [#allocation8], %s28
      %s30 = sshll.u32 [#allocation7], 4
      %s31 = int_to_ptr.vmem [resolvable:$true] %s30
      %36 = dma.hbm_to_vmem [thread:$0]  %s2, 384, %s31, [#allocation8], 128, 128, 8
    $region9: #{tpu_custom_call.1} parent=1 // pred_fallthru
      _
    // Predicated region
    $region10: #{tpu_custom_call.1} parent=1 // pred_check
      _
    $region11: #{tpu_custom_call.1} parent=1 // pred_check_branch
      %38 = sbr.rel (0) target = $region13
    $region12: #{tpu_custom_call.1} parent=1 // pred_region
      %39 = dma.done [#allocation5], 128
    $region13: #{tpu_custom_call.1} parent=1 // pred_fallthru
      _
    // Predicated region
    $region14: #{tpu_custom_call.1} parent=1 // pred_check
      _
    $region15: #{tpu_custom_call.1} parent=1 // pred_check_branch
      %41 = sbr.rel (0) target = $region17
    $region16: #{tpu_custom_call.1} parent=1 // pred_region
      %42 = dma.done [#allocation8], 384
    $region17: #{tpu_custom_call.1} parent=1 // pred_fallthru
      _
    %p43 = scmp.eq.s32.totalorder 0, 0
    // Predicated region
    $region18: #{tpu_custom_call.1} parent=1 // pred_check
      %p44 = pneg %p43
    $region19: #{tpu_custom_call.1} parent=1 // pred_check_branch
      %46 = sbr.rel (%p44) target = $region21
    $region20: #{tpu_custom_call.1} parent=1 // pred_region
      %47 = vst [vmem:[#allocation9] sm:$0xff] 0.0
      %48 = vst [vmem:[#allocation10] sm:$0xff] 0.0
    $region21: #{tpu_custom_call.1} parent=1 // pred_fallthru
      _
    %v49 = vld [vmem:[#allocation4] sm:$0xff]
    %v50 = vld [vmem:[#allocation7] sm:$0xff]
    %s51 = scalar_lea.vmem [#allocation7], 8
    %v52 = vld [vmem:[%s51] sm:$0xff]
    %s53 = scalar_lea.vmem [#allocation7], 16
    %v54 = vld [vmem:[%s53] sm:$0xff]
    %v55 = vmul.f32 %v50, %v50
    %v56 = vmul.f32 %v52, %v52
    %v57 = vadd.f32 %v55, %v56
    %v58 = vmul.f32 %v54, %v54
    %v59 = vadd.f32 %v57, %v58
    %v60 = vrsqrt.pop %v59
    %v61 = vmul.f32 %v59, %v60
    %vm62 = vcmp.eq.f32.partialorder %v59, inf
    %v63 = vsel %vm62, %v59, %v61
    %vm64 = vcmp.eq.f32.partialorder %v59, 0.0
    %v65 = vand.u32 %v59, 2147483648
    %v66 = vsel %vm64, %v65, %v63
    %v67 = vsub.f32 %v66, 1.0
    %v68 = vand.u32 2147483647, %v67
    %v69 = vand.u32 2147483647, %v49
    %v70 = vmul.f32 %v69, -100.0
    %v71 = vmul.f32 %v70, 1.442695
    %v72 = vpow.pop %v71
    %v73 = vld [vmem:[#allocation9] sm:$0xff]
    %v74 = vadd.f32 %v68, 0.0
    %v75 = vadd.f32 %v73, %v74
    %76 = vst [vmem:[#allocation9] sm:$0xff] %v75
    %v77 = vld [vmem:[#allocation10] sm:$0xff]
    %v78 = vadd.f32 %v72, 0.0
    %v79 = vadd.f32 %v77, %v78
    %80 = vst [vmem:[#allocation10] sm:$0xff] %v79
    // Predicated region
    $region22: #{tpu_custom_call.1} parent=1 // pred_check
      _
    $region23: #{tpu_custom_call.1} parent=1 // pred_check_branch
      %82 = sbr.rel (0) target = $region25
    $region24: #{tpu_custom_call.1} parent=1 // pred_region
      %s84 = ssub.s32 128, 128
      %85 = vsyncadd [#allocation6], %s84
      %s87 = sshll.u32 [#allocation9], 4
      %s88 = int_to_ptr.vmem [resolvable:$true] %s87
      %90 = dma.vmem_to_hbm [thread:$0]  %s88, 128, %s3, [#allocation6]
    $region25: #{tpu_custom_call.1} parent=1 // pred_fallthru
      _
    // Predicated region
    $region26: #{tpu_custom_call.1} parent=1 // pred_check
      _
    $region27: #{tpu_custom_call.1} parent=1 // pred_check_branch
      %92 = sbr.rel (0) target = $region29
    $region28: #{tpu_custom_call.1} parent=1 // pred_region
      %s94 = ssub.s32 128, 128
      %95 = vsyncadd [#allocation11], %s94
      %s97 = sshll.u32 [#allocation10], 4
      %s98 = int_to_ptr.vmem [resolvable:$true] %s97
      %100 = dma.vmem_to_hbm [thread:$0]  %s98, 128, %s4, [#allocation11]
    $region29: #{tpu_custom_call.1} parent=1 // pred_fallthru
      _
    // Predicated region
    $region30: #{tpu_custom_call.1} parent=1 // pred_check
      _
    $region31: #{tpu_custom_call.1} parent=1 // pred_check_branch
      %102 = sbr.rel (0) target = $region33
    $region32: #{tpu_custom_call.1} parent=1 // pred_region
      %103 = dma.done [#allocation6], 128
    $region33: #{tpu_custom_call.1} parent=1 // pred_fallthru
      _
    // Predicated region
    $region34: #{tpu_custom_call.1} parent=1 // pred_check
      _
    $region35: #{tpu_custom_call.1} parent=1 // pred_check_branch
      %105 = sbr.rel (0) target = $region37
    $region36: #{tpu_custom_call.1} parent=1 // pred_region
      %106 = dma.done [#allocation11], 128
    $region37: #{tpu_custom_call.1} parent=1 // pred_fallthru
      _
    %107 = vsyncpa [#allocation5], 1
    %108 = vsyncpa [#allocation8], 1
    %109 = vsyncpa [#allocation6], 1
    %110 = vsyncpa [#allocation11], 1

</llo_original>
